<compile_context>
chip_gen: v7x
topology: tpu7x:2x2x1
jax: 0.10.0
libtpu: 0.0.40
codegen_flags: <defaults>
</compile_context>

<pallas_src>
import functools
import re

import jax
import jax.numpy as jnp
from jax import lax
from jax.experimental import pallas as pl
from jax.experimental.pallas import tpu as pltpu


def _round_up(x, m):
    return (x + m - 1) // m * m


def _tpu_generation():
    """Best-effort TPU generation (5, 6, 7, ...); None if it cannot be determined."""
    try:
        kind = str(jax.devices()[0].device_kind).lower()
        m = re.search(r"v(\d+)", kind)
        if m:
            return int(m.group(1))
    except Exception:
        pass
    return None


def _vmem_capacity_bytes():
    """Per-core VMEM capacity; conservative 64 MiB (v7x) fallback if query fails."""
    try:
        return int(pltpu.get_tpu_info().vmem_capacity_bytes)
    except Exception:
        return 64 << 20


def _loopnet_kernel(vals_ref, w_ref, out_ref, *, num_iters, num_chunks,
                    select_in_bf16, max_unroll):
    """Runs num_iters synchronous field/update steps with W resident in VMEM.

    vals_ref: (TB, Np) bf16   current unit values (+1 / -1), batch tile
    w_ref:    (Np, Np) bf16   symmetric zero-diagonal coupling matrix (padded)
    out_ref:  (TB, Np) bf16   values after num_iters updates
    """
    w = w_ref[...]                       # bf16, resident for all iterations
    tb = vals_ref.shape[0]
    chunk = tb // num_chunks

    def step(vals):
        # compute_fields: fields = vals @ W   (bf16 MXU matmul, f32 accumulate)
        fields = tuple(
            jnp.dot(v, w, preferred_element_type=jnp.float32) for v in vals)
        # update: vals <- discretize(fields) = 2*(fields > 0) - 1
        if select_in_bf16:
            one = jnp.asarray(1.0, jnp.bfloat16)
            return tuple(jnp.where(f > 0, one, -one) for f in fields)
        return tuple(
            jnp.where(f > 0, 1.0, -1.0).astype(jnp.bfloat16) for f in fields)

    # Two independent sub-tiles (when enabled) give the scheduler a second
    # matmul/select chain to fill MXU result-pop / select latency bubbles.
    vals = tuple(vals_ref[pl.ds(c * chunk, chunk), :] for c in range(num_chunks))

    if num_iters <= max_unroll:
        for _ in range(num_iters):        # fully unrolled (static trip count)
            vals = step(vals)
    else:
        vals = lax.fori_loop(0, num_iters, lambda _, v: step(v), vals, unroll=4)

    for c in range(num_chunks):
        out_ref[pl.ds(c * chunk, chunk), :] = vals[c]


def loopnet_forward(in_vals, weights, num_iters, *, max_batch_tile=None):
    """Pallas wrapper for AbstractLoopNet.forward(in_vals, num_iters)."""
    B, N = in_vals.shape
    assert weights.shape == (N, N)

    gen = _tpu_generation()

    # Lane-dense padding of the unit dimension (zero rows/cols are inert:
    # padded units see zero fields -> -1, and feed back through zero W rows).
    Np = _round_up(max(N, 128), 128)

    # Batch tile: multiple of 16 (bf16 native sublane tile); 256 cap on
    # v6e/v7x (256-wide MXU), 128 on v5e / unknown.  On v7x split the batch
    # into >=2 grid steps so both TensorCores get work.
    tb_cap = 256 if (gen is not None and gen >= 6) else 128
    if max_batch_tile is not None:
        tb_cap = min(tb_cap, max(16, _round_up(max_batch_tile, 16)))
    b16 = _round_up(max(B, 16), 16)
    TB = min(tb_cap, b16)
    if gen is not None and gen >= 7 and b16 > 16:
        TB = min(TB, _round_up(pl.cdiv(b16, 2), 16))
    Bp = _round_up(b16, TB)

    vals_p = jnp.pad(in_vals.astype(jnp.float32),
                     ((0, Bp - B), (0, Np - N))).astype(jnp.bfloat16)
    w_p = jnp.pad(weights.astype(jnp.float32),
                  ((0, Np - N), (0, Np - N))).astype(jnp.bfloat16)

    num_chunks = 2 if (TB >= 32 and TB % 32 == 0) else 1
    select_in_bf16 = gen is not None and gen >= 6   # bf16 VPU on v6e/v7x

    kernel = functools.partial(
        _loopnet_kernel, num_iters=num_iters, num_chunks=num_chunks,
        select_in_bf16=select_in_bf16, max_unroll=16)

    cost = pl.CostEstimate(
        flops=2 * Bp * Np * Np * max(num_iters, 1),
        transcendentals=0,
        bytes_accessed=Np * Np * 2 + 2 * Bp * Np * 2)

    cap = _vmem_capacity_bytes()

    def run(w_buffers, w_pipeline_mode):
        # VMEM budget: W buffers + double-buffered bf16 in / bf16 out tiles.
        w_bytes = w_buffers * Np * Np * 2
        io_bytes = 2 * TB * Np * (2 + 2)
        vmem_limit = int(max(min(w_bytes + io_bytes + (2 << 20),
                                 cap - (8 << 20)),
                             16 << 20))
        if w_pipeline_mode is None:
            w_spec = pl.BlockSpec((Np, Np), lambda i: (0, 0))
        else:
            w_spec = pl.BlockSpec((Np, Np), lambda i: (0, 0),
                                  pipeline_mode=w_pipeline_mode)
        return pl.pallas_call(
            kernel,
            out_shape=jax.ShapeDtypeStruct((Bp, Np), jnp.bfloat16),
            grid=(Bp // TB,),
            in_specs=[
                pl.BlockSpec((TB, Np), lambda i: (i, 0)),   # vals: batch-tiled
                w_spec,                                      # W: resident
            ],
            out_specs=pl.BlockSpec((TB, Np), lambda i: (i, 0)),
            compiler_params=pltpu.CompilerParams(
                dimension_semantics=("parallel",),
                vmem_limit_bytes=vmem_limit,
            ),
            cost_estimate=cost,
        )(vals_p, w_p)

    try:
        # W's block index never changes -> a single pipeline buffer suffices.
        out = run(1, pl.Buffered(1))
    except Exception:
        # Fallback for Pallas versions that reject Buffered(1) on pallas_call.
        out = run(2, None)

    return out[:B, :N].astype(jnp.float32)


def make_weights(key, num_units):
    """Deterministic xavier-normal init + fix_weights (symmetrize, zero diag)."""
    std = jnp.sqrt(2.0 / (num_units + num_units))
    w = jax.random.normal(key, (num_units, num_units), dtype=jnp.float32) * std
    mask = 1.0 - jnp.eye(num_units, dtype=jnp.float32)
    w = mask * ((w + w.T) / 2.0)
    return w


def loopnet_forward_ref(in_vals, weights, num_iters):
    """Pure-JAX reference mirroring the kernel numerics (bf16 inputs, f32 acc)."""
    vals = in_vals.astype(jnp.float32)
    w = weights.astype(jnp.bfloat16).astype(jnp.float32)
    for _ in range(num_iters):
        fields = vals.astype(jnp.bfloat16).astype(jnp.float32) @ w
        # discretize: fields == 0 maps to -1, matching (fields > 0) semantics
        vals = jnp.where(fields > 0, 1.0, -1.0)
    return vals


if __name__ == "__main__":
    key = jax.random.PRNGKey(0)
    k_w, k_v, k_w2, k_v2 = jax.random.split(key, 4)

    # --- Test 1: small shapes, exact match vs numerics-matched reference. ---
    batch, num_units, num_iters = 2, 32, 4
    weights = make_weights(k_w, num_units)
    raw = jax.random.normal(k_v, (batch, num_units), dtype=jnp.float32)
    in_vals = 2.0 * (raw > 0).astype(jnp.float32) - 1.0

    out = jax.block_until_ready(loopnet_forward(in_vals, weights, num_iters))
    ref = loopnet_forward_ref(in_vals, weights, num_iters)
    assert out.shape == (batch, num_units)
    assert out.dtype == jnp.float32
    assert jnp.allclose(out, ref), "Pallas result mismatch vs reference (small)"

    # --- Test 2: larger shapes exercise batch tiling, sub-tile interleave and
    # the fori_loop path.  Thresholded trajectories can flip when a field lands
    # extremely close to 0 (MXU vs XLA accumulation order), so allow a tiny
    # per-element mismatch rate rather than requiring bit-exact trajectories.
    batch2, num_units2, num_iters2 = 96, 200, 20
    weights2 = make_weights(k_w2, num_units2)
    raw2 = jax.random.normal(k_v2, (batch2, num_units2), dtype=jnp.float32)
    in_vals2 = 2.0 * (raw2 > 0).astype(jnp.float32) - 1.0

    out2 = jax.block_until_ready(loopnet_forward(in_vals2, weights2, num_iters2))
    ref2 = loopnet_forward_ref(in_vals2, weights2, num_iters2)
    assert out2.shape == (batch2, num_units2)
    assert out2.dtype == jnp.float32
    assert bool(jnp.all(jnp.abs(out2) == 1.0)), "outputs must be +/-1"
    mismatch = float(jnp.mean((out2 != ref2).astype(jnp.float32)))
    assert mismatch < 0.05, f"excessive divergence vs reference: {mismatch:.4f}"

    print("KERNEL_OK")
</pallas_src>

<mosaic_0001>
module attributes {stable_mosaic.version = 11 : i64} {
  func.func @_loopnet_kernel(%arg0: i32, %arg1: memref<16x128xbf16, #tpu.memory_space<vmem>>, %arg2: memref<128x128xbf16, #tpu.memory_space<vmem>>, %arg3: memref<16x128xbf16, #tpu.memory_space<vmem>>) attributes {dimension_semantics = [#tpu.dimension_semantics<parallel>], iteration_bounds = array<i64: 1>, scalar_prefetch = 0 : i64, scratch_operands = 0 : i64, tpu.core_type = #tpu.core_type<tc>, window_params = [{transform_indices = @transform_0, window_bounds = array<i64: 16, 128>}, {pipeline_mode = #tpu.pipeline_mode<synchronous>, transform_indices = @transform_1, window_bounds = array<i64: 128, 128>}, {transform_indices = @transform_2, window_bounds = array<i64: 16, 128>}]} {
    %c0 = arith.constant 0 : index
    %c0_0 = arith.constant 0 : index
    %0 = vector.load %arg2[%c0, %c0_0] : memref<128x128xbf16, #tpu.memory_space<vmem>>, vector<128x128xbf16>
    %c0_1 = arith.constant 0 : index
    %c0_2 = arith.constant 0 : index
    %1 = vector.load %arg1[%c0_1, %c0_2] : memref<16x128xbf16, #tpu.memory_space<vmem>>, vector<16x128xbf16>
    %cst = arith.constant dense<0.000000e+00> : vector<16x128xf32>
    %2 = tpu.matmul %1, %0, %cst {dimension_numbers = #tpu.dot_dimension_numbers<[1], [0], [0], [1], [0, 0, 1, 1], [], []>} : vector<16x128xbf16>, vector<128x128xbf16>, vector<16x128xf32> -> vector<16x128xf32>
    %cst_3 = arith.constant 0.000000e+00 : f32
    %3 = vector.broadcast %cst_3 : f32 to vector<16x128xf32>
    %4 = arith.cmpf ogt, %2, %3 : vector<16x128xf32>
    %cst_4 = arith.constant 1.000000e+00 : f32
    %cst_5 = arith.constant -1.000000e+00 : f32
    %5 = vector.broadcast %cst_4 : f32 to vector<16x128xf32>
    %6 = vector.broadcast %cst_5 : f32 to vector<16x128xf32>
    %7 = arith.select %4, %5, %6 : vector<16x128xi1>, vector<16x128xf32>
    %8 = arith.truncf %7 : vector<16x128xf32> to vector<16x128xbf16>
    %cst_6 = arith.constant dense<0.000000e+00> : vector<16x128xf32>
    %9 = tpu.matmul %8, %0, %cst_6 {dimension_numbers = #tpu.dot_dimension_numbers<[1], [0], [0], [1], [0, 0, 1, 1], [], []>} : vector<16x128xbf16>, vector<128x128xbf16>, vector<16x128xf32> -> vector<16x128xf32>
    %cst_7 = arith.constant 0.000000e+00 : f32
    %10 = vector.broadcast %cst_7 : f32 to vector<16x128xf32>
    %11 = arith.cmpf ogt, %9, %10 : vector<16x128xf32>
    %cst_8 = arith.constant 1.000000e+00 : f32
    %cst_9 = arith.constant -1.000000e+00 : f32
    %12 = vector.broadcast %cst_8 : f32 to vector<16x128xf32>
    %13 = vector.broadcast %cst_9 : f32 to vector<16x128xf32>
    %14 = arith.select %11, %12, %13 : vector<16x128xi1>, vector<16x128xf32>
    %15 = arith.truncf %14 : vector<16x128xf32> to vector<16x128xbf16>
    %cst_10 = arith.constant dense<0.000000e+00> : vector<16x128xf32>
    %16 = tpu.matmul %15, %0, %cst_10 {dimension_numbers = #tpu.dot_dimension_numbers<[1], [0], [0], [1], [0, 0, 1, 1], [], []>} : vector<16x128xbf16>, vector<128x128xbf16>, vector<16x128xf32> -> vector<16x128xf32>
    %cst_11 = arith.constant 0.000000e+00 : f32
    %17 = vector.broadcast %cst_11 : f32 to vector<16x128xf32>
    %18 = arith.cmpf ogt, %16, %17 : vector<16x128xf32>
    %cst_12 = arith.constant 1.000000e+00 : f32
    %cst_13 = arith.constant -1.000000e+00 : f32
    %19 = vector.broadcast %cst_12 : f32 to vector<16x128xf32>
    %20 = vector.broadcast %cst_13 : f32 to vector<16x128xf32>
    %21 = arith.select %18, %19, %20 : vector<16x128xi1>, vector<16x128xf32>
    %22 = arith.truncf %21 : vector<16x128xf32> to vector<16x128xbf16>
    %cst_14 = arith.constant dense<0.000000e+00> : vector<16x128xf32>
    %23 = tpu.matmul %22, %0, %cst_14 {dimension_numbers = #tpu.dot_dimension_numbers<[1], [0], [0], [1], [0, 0, 1, 1], [], []>} : vector<16x128xbf16>, vector<128x128xbf16>, vector<16x128xf32> -> vector<16x128xf32>
    %cst_15 = arith.constant 0.000000e+00 : f32
    %24 = vector.broadcast %cst_15 : f32 to vector<16x128xf32>
    %25 = arith.cmpf ogt, %23, %24 : vector<16x128xf32>
    %cst_16 = arith.constant 1.000000e+00 : f32
    %cst_17 = arith.constant -1.000000e+00 : f32
    %26 = vector.broadcast %cst_16 : f32 to vector<16x128xf32>
    %27 = vector.broadcast %cst_17 : f32 to vector<16x128xf32>
    %28 = arith.select %25, %26, %27 : vector<16x128xi1>, vector<16x128xf32>
    %29 = arith.truncf %28 : vector<16x128xf32> to vector<16x128xbf16>
    %c0_18 = arith.constant 0 : index
    %c0_19 = arith.constant 0 : index
    %30 = vector.load %arg3[%c0_18, %c0_19] : memref<16x128xbf16, #tpu.memory_space<vmem>>, vector<16x128xbf16>
    tpu.vector_store %arg3[%c0_18, %c0_19], %29 {strides = array<i32>} : memref<16x128xbf16, #tpu.memory_space<vmem>>, vector<16x128xbf16>,
    return
  }
  func.func @transform_0(%arg0: i32) -> (i32, i32) {
    %c0_i32 = arith.constant 0 : i32
    %c0_i32_0 = arith.constant 0 : i32
    return %arg0, %c0_i32 : i32, i32
  }
  func.func @transform_1(%arg0: i32) -> (i32, i32) {
    %c0_i32 = arith.constant 0 : i32
    %c0_i32_0 = arith.constant 0 : i32
    %c0_i32_1 = arith.constant 0 : i32
    return %c0_i32, %c0_i32_0 : i32, i32
  }
  func.func @transform_2(%arg0: i32) -> (i32, i32) {
    %c0_i32 = arith.constant 0 : i32
    %c0_i32_0 = arith.constant 0 : i32
    return %arg0, %c0_i32 : i32, i32
  }
}

module attributes {stable_mosaic.version = 11 : i64} {
  func.func @_loopnet_kernel(%arg0: i32, %arg1: memref<16x128xbf16, #tpu.memory_space<vmem>>, %arg2: memref<128x128xbf16, #tpu.memory_space<vmem>>, %arg3: memref<16x128xbf16, #tpu.memory_space<vmem>>) attributes {dimension_semantics = [#tpu.dimension_semantics<parallel>], iteration_bounds = array<i64: 1>, scalar_prefetch = 0 : i64, scratch_operands = 0 : i64, tpu.core_type = #tpu.core_type<tc>, window_params = [{transform_indices = @transform_0, window_bounds = array<i64: 16, 128>}, {pipeline_mode = #tpu.pipeline_mode<synchronous>, transform_indices = @transform_1, window_bounds = array<i64: 128, 128>}, {transform_indices = @transform_2, window_bounds = array<i64: 16, 128>}]} {
    %c0 = arith.constant 0 : index
    %c0_0 = arith.constant 0 : index
    %0 = vector.load %arg2[%c0, %c0_0] : memref<128x128xbf16, #tpu.memory_space<vmem>>, vector<128x128xbf16>
    %c0_1 = arith.constant 0 : index
    %c0_2 = arith.constant 0 : index
    %1 = vector.load %arg1[%c0_1, %c0_2] : memref<16x128xbf16, #tpu.memory_space<vmem>>, vector<16x128xbf16>
    %cst = arith.constant dense<0.000000e+00> : vector<16x128xf32>
    %2 = tpu.matmul %1, %0, %cst {dimension_numbers = #tpu.dot_dimension_numbers<[1], [0], [0], [1], [0, 0, 1, 1], [], []>} : vector<16x128xbf16>, vector<128x128xbf16>, vector<16x128xf32> -> vector<16x128xf32>
    %cst_3 = arith.constant 0.000000e+00 : f32
    %3 = vector.broadcast %cst_3 : f32 to vector<16x128xf32>
    %4 = arith.cmpf ogt, %2, %3 : vector<16x128xf32>
    %cst_4 = arith.constant 1.000000e+00 : f32
    %cst_5 = arith.constant -1.000000e+00 : f32
    %5 = vector.broadcast %cst_4 : f32 to vector<16x128xf32>
    %6 = vector.broadcast %cst_5 : f32 to vector<16x128xf32>
    %7 = arith.select %4, %5, %6 : vector<16x128xi1>, vector<16x128xf32>
    %8 = arith.truncf %7 : vector<16x128xf32> to vector<16x128xbf16>
    %cst_6 = arith.constant dense<0.000000e+00> : vector<16x128xf32>
    %9 = tpu.matmul %8, %0, %cst_6 {dimension_numbers = #tpu.dot_dimension_numbers<[1], [0], [0], [1], [0, 0, 1, 1], [], []>} : vector<16x128xbf16>, vector<128x128xbf16>, vector<16x128xf32> -> vector<16x128xf32>
    %cst_7 = arith.constant 0.000000e+00 : f32
    %10 = vector.broadcast %cst_7 : f32 to vector<16x128xf32>
    %11 = arith.cmpf ogt, %9, %10 : vector<16x128xf32>
    %cst_8 = arith.constant 1.000000e+00 : f32
    %cst_9 = arith.constant -1.000000e+00 : f32
    %12 = vector.broadcast %cst_8 : f32 to vector<16x128xf32>
    %13 = vector.broadcast %cst_9 : f32 to vector<16x128xf32>
    %14 = arith.select %11, %12, %13 : vector<16x128xi1>, vector<16x128xf32>
    %15 = arith.truncf %14 : vector<16x128xf32> to vector<16x128xbf16>
    %cst_10 = arith.constant dense<0.000000e+00> : vector<16x128xf32>
    %16 = tpu.matmul %15, %0, %cst_10 {dimension_numbers = #tpu.dot_dimension_numbers<[1], [0], [0], [1], [0, 0, 1, 1], [], []>} : vector<16x128xbf16>, vector<128x128xbf16>, vector<16x128xf32> -> vector<16x128xf32>
    %cst_11 = arith.constant 0.000000e+00 : f32
    %17 = vector.broadcast %cst_11 : f32 to vector<16x128xf32>
    %18 = arith.cmpf ogt, %16, %17 : vector<16x128xf32>
    %cst_12 = arith.constant 1.000000e+00 : f32
    %cst_13 = arith.constant -1.000000e+00 : f32
    %19 = vector.broadcast %cst_12 : f32 to vector<16x128xf32>
    %20 = vector.broadcast %cst_13 : f32 to vector<16x128xf32>
    %21 = arith.select %18, %19, %20 : vector<16x128xi1>, vector<16x128xf32>
    %22 = arith.truncf %21 : vector<16x128xf32> to vector<16x128xbf16>
    %cst_14 = arith.constant dense<0.000000e+00> : vector<16x128xf32>
    %23 = tpu.matmul %22, %0, %cst_14 {dimension_numbers = #tpu.dot_dimension_numbers<[1], [0], [0], [1], [0, 0, 1, 1], [], []>} : vector<16x128xbf16>, vector<128x128xbf16>, vector<16x128xf32> -> vector<16x128xf32>
    %cst_15 = arith.constant 0.000000e+00 : f32
    %24 = vector.broadcast %cst_15 : f32 to vector<16x128xf32>
    %25 = arith.cmpf ogt, %23, %24 : vector<16x128xf32>
    %cst_16 = arith.constant 1.000000e+00 : f32
    %cst_17 = arith.constant -1.000000e+00 : f32
    %26 = vector.broadcast %cst_16 : f32 to vector<16x128xf32>
    %27 = vector.broadcast %cst_17 : f32 to vector<16x128xf32>
    %28 = arith.select %25, %26, %27 : vector<16x128xi1>, vector<16x128xf32>
    %29 = arith.truncf %28 : vector<16x128xf32> to vector<16x128xbf16>
    %c0_18 = arith.constant 0 : index
    %c0_19 = arith.constant 0 : index
    %30 = vector.load %arg3[%c0_18, %c0_19] : memref<16x128xbf16, #tpu.memory_space<vmem>>, vector<16x128xbf16>
    tpu.vector_store %arg3[%c0_18, %c0_19], %29 {strides = array<i32>} : memref<16x128xbf16, #tpu.memory_space<vmem>>, vector<16x128xbf16>,
    return
  }
  func.func @transform_0(%arg0: i32) -> (i32, i32) {
    %c0_i32 = arith.constant 0 : i32
    %c0_i32_0 = arith.constant 0 : i32
    return %arg0, %c0_i32 : i32, i32
  }
  func.func @transform_1(%arg0: i32) -> (i32, i32) {
    %c0_i32 = arith.constant 0 : i32
    %c0_i32_0 = arith.constant 0 : i32
    %c0_i32_1 = arith.constant 0 : i32
    return %c0_i32, %c0_i32_0 : i32, i32
  }
  func.func @transform_2(%arg0: i32) -> (i32, i32) {
    %c0_i32 = arith.constant 0 : i32
    %c0_i32_0 = arith.constant 0 : i32
    return %arg0, %c0_i32 : i32, i32
  }
}

</mosaic_0001>

<llo_original>
// kernel: tpu_custom_call.1
$region0: #{tpu_custom_call.1}
  #allocation0 [shape = 'u32[]', space=smem, size = 0x4, offset = 0x4, fixed_abs, tag = 'smem constant byte address 0x4 - core index']
  #allocation1 [shape = 'u32[144,128]{1,0:T(1,128)}', space=vmem, size = 0x12000, scoped, tag = 'internal scratch']
  %s0 = inlined_call_operand.hbm [shape: bf16[16,128], index: 0, kind: input, shape index: {}]
  %s1 = inlined_call_operand.hbm [shape: bf16[128,128], index: 1, kind: input, shape index: {}]
  %s2 = inlined_call_operand.hbm [shape: bf16[16,128], index: 2, kind: output, shape index: {}]
  %s3 = sld [smem:[#allocation0]]
  $region26: #{tpu_custom_call.1} parent=0
    _
  %s5 = ssub.s32 1, %s3
  %s6 = scalar_select 0, %s5, %s3
  $region1: #{tpu_custom_call.1} parent=0
    #allocation2 [shape = 'u8[4096]{0}', space=vmem, size = 0x1000, scoped, tag = 'input window, operand 0, single buffered']
    #allocation3 [shape = 's32[1]{0}', space=sflag, size = 0x4, scoped, tag = 'scoped memory for tpu_custom_call.1']
    #allocation4 [shape = 's32[1]{0}', space=sflag, size = 0x4, scoped, tag = 'scoped memory for tpu_custom_call.1']
    #allocation5 [shape = 'u8[32768]{0}', space=vmem, size = 0x8000, scoped, tag = 'input window, operand 1, single buffered']
    #allocation6 [shape = 's32[1]{0}', space=sflag, size = 0x4, scoped, tag = 'scoped memory for tpu_custom_call.1']
    #allocation7 [shape = 'u8[4096]{0}', space=vmem, size = 0x1000, scoped, tag = 'output window, operand 0, single buffered']
    %7 = vsyncpa [#allocation3], 0
    %8 = vsyncpa [#allocation6], 0
    %9 = vsyncpa [#allocation4], 0
    // Predicated region
    $region2: #{tpu_custom_call.1} parent=1 // pred_check
      _
    $region3: #{tpu_custom_call.1} parent=1 // pred_check_branch
      %11 = sbr.rel (0) target = $region5
    $region4: #{tpu_custom_call.1} parent=1 // pred_region
      %s13 = ssub.s32 128, 128
      %14 = vsyncadd [#allocation3], %s13
      %s15 = sshll.u32 [#allocation2], 4
      %s16 = int_to_ptr.vmem [resolvable:$true] %s15
      %21 = dma.hbm_to_vmem [thread:$0]  %s0, 128, %s16, [#allocation3], 64, 64, 4
    $region5: #{tpu_custom_call.1} parent=1 // pred_fallthru
      _
    // Predicated region
    $region6: #{tpu_custom_call.1} parent=1 // pred_check
      _
    $region7: #{tpu_custom_call.1} parent=1 // pred_check_branch
      %23 = sbr.rel (0) target = $region9
    $region8: #{tpu_custom_call.1} parent=1 // pred_region
      %s25 = ssub.s32 1024, 1024
      %26 = vsyncadd [#allocation6], %s25
      %s27 = sshll.u32 [#allocation5], 4
      %s28 = int_to_ptr.vmem [resolvable:$true] %s27
      %33 = dma.hbm_to_vmem [thread:$0]  %s1, 1024, %s28, [#allocation6], 64, 64, 4
    $region9: #{tpu_custom_call.1} parent=1 // pred_fallthru
      _
    // Predicated region
    $region10: #{tpu_custom_call.1} parent=1 // pred_check
      _
    $region11: #{tpu_custom_call.1} parent=1 // pred_check_branch
      %35 = sbr.rel (0) target = $region13
    $region12: #{tpu_custom_call.1} parent=1 // pred_region
      %36 = dma.done [#allocation3], 128
    $region13: #{tpu_custom_call.1} parent=1 // pred_fallthru
      _
    // Predicated region
    $region14: #{tpu_custom_call.1} parent=1 // pred_check
      _
    $region15: #{tpu_custom_call.1} parent=1 // pred_check_branch
      %38 = sbr.rel (0) target = $region17
    $region16: #{tpu_custom_call.1} parent=1 // pred_region
      %39 = dma.done [#allocation6], 1024
    $region17: #{tpu_custom_call.1} parent=1 // pred_fallthru
      _
    %v41 = vld [vmem:[#allocation5] sm:$0xf]
    %v42 = vld [vmem:[#allocation5 + $0x4] sm:$0xf]
    %v43 = vld [vmem:[#allocation5 + $0x8] sm:$0xf]
    %v44 = vld [vmem:[#allocation5 + $0xc] sm:$0xf]
    %v45 = vld [vmem:[#allocation5 + $0x10] sm:$0xf]
    %v46 = vld [vmem:[#allocation5 + $0x14] sm:$0xf]
    %v47 = vld [vmem:[#allocation5 + $0x18] sm:$0xf]
    %v48 = vld [vmem:[#allocation5 + $0x1c] sm:$0xf]
    %v49 = vld [vmem:[#allocation5 + $0x20] sm:$0xf]
    %v50 = vld [vmem:[#allocation5 + $0x24] sm:$0xf]
    %v51 = vld [vmem:[#allocation5 + $0x28] sm:$0xf]
    %v52 = vld [vmem:[#allocation5 + $0x2c] sm:$0xf]
    %v53 = vld [vmem:[#allocation5 + $0x30] sm:$0xf]
    %v54 = vld [vmem:[#allocation5 + $0x34] sm:$0xf]
    %v55 = vld [vmem:[#allocation5 + $0x38] sm:$0xf]
    %v56 = vld [vmem:[#allocation5 + $0x3c] sm:$0xf]
    %v57 = vld [vmem:[#allocation2] sm:$0xf]
    %v58 = vld [vmem:[#allocation2 + $0x4] sm:$0xf]
    %v61 = vunpack.c.l.b16 %v57
    %v62 = vunpack.c.l.b16 %v58
    %v63 = vpack.c.b16 %v62, %v61
    %v81 = vunpack.c.l.b16 %v41
    %v82 = vunpack.c.l.b16 %v42
    %v83 = vunpack.c.l.b16 %v43
    %v84 = vunpack.c.l.b16 %v44
    %v85 = vunpack.c.l.b16 %v45
    %v86 = vunpack.c.l.b16 %v46
    %v87 = vunpack.c.l.b16 %v47
    %v88 = vunpack.c.l.b16 %v48
    %v89 = vunpack.c.l.b16 %v49
    %v90 = vunpack.c.l.b16 %v50
    %v91 = vunpack.c.l.b16 %v51
    %v92 = vunpack.c.l.b16 %v52
    %v93 = vunpack.c.l.b16 %v53
    %v94 = vunpack.c.l.b16 %v54
    %v95 = vunpack.c.l.b16 %v55
    %v96 = vunpack.c.l.b16 %v56
    %v97 = vpack.c.b16 %v82, %v81
    %v98 = vpack.c.b16 %v84, %v83
    %v99 = vpack.c.b16 %v86, %v85
    %v100 = vpack.c.b16 %v88, %v87
    %v101 = vpack.c.b16 %v90, %v89
    %v102 = vpack.c.b16 %v92, %v91
    %v103 = vpack.c.b16 %v94, %v93
    %v104 = vpack.c.b16 %v96, %v95
    %113 = vmatprep.subr.bf16.mxu0 0
    %114 = vmatpush1.bf16.msra.mxu0 %v97
    %115 = vmatprep.subr.bf16.mxu0 0
    %116 = vmatpush1.bf16.msra.mxu0 %v98
    %117 = vmatprep.subr.bf16.mxu0 0
    %118 = vmatpush1.bf16.msra.mxu0 %v99
    %119 = vmatprep.subr.bf16.mxu0 0
    %120 = vmatpush1.bf16.msra.mxu0 %v100
    %121 = vmatprep.subr.bf16.mxu0 0
    %122 = vmatpush1.bf16.msra.mxu0 %v101
    %123 = vmatprep.subr.bf16.mxu0 0
    %124 = vmatpush1.bf16.msra.mxu0 %v102
    %125 = vmatprep.subr.bf16.mxu0 0
    %126 = vmatpush1.bf16.msra.mxu0 %v103
    %127 = vmatprep.subr.bf16.mxu0 0
    %128 = vmatpush1.bf16.msra.mxu0 %v104
    %129 = vmatprep.subr.bf16.mxu0 0
    %130 = vmatpush1.bf16.msra.mxu0 0
    %131 = vmatprep.subr.bf16.mxu0 0
    %132 = vmatpush1.bf16.msra.mxu0 0
    %133 = vmatprep.subr.bf16.mxu0 0
    %134 = vmatpush1.bf16.msra.mxu0 0
    %135 = vmatprep.subr.bf16.mxu0 0
    %136 = vmatpush1.bf16.msra.mxu0 0
    %137 = vmatprep.subr.bf16.mxu0 0
    %138 = vmatpush1.bf16.msra.mxu0 0
    %139 = vmatprep.subr.bf16.mxu0 0
    %140 = vmatpush1.bf16.msra.mxu0 0
    %141 = vmatprep.subr.bf16.mxu0 0
    %142 = vmatpush1.bf16.msra.mxu0 0
    %143 = vmatprep.subr.bf16.mxu0 0
    %144 = vmatpush1.bf16.msra.mxu0 0
    %145 = vmatprep.mubr.bf16.mxu0 0
    %146 = vmatmul.mubr.bf16.gmra.mrb[0].mxu0 %v63
    %v147 = vpop.f32.mrb[0].mxu0
    %v148 = vadd.f32 0.0, %v147
    %v149 = vpop.f32.mrb[0].mxu0
    %v150 = vpop.f32.mrb[0].mxu0
    %v151 = vadd.f32 0.0, %v150
    %v152 = vpop.f32.mrb[0].mxu0
    %153 = vdwg.mxu0
    %vm154 = vcmp.gt.f32.partialorder %v148, 0.0
    %vm155 = vcmp.gt.f32.partialorder %v151, 0.0
    %v156 = vsel %vm154, 1.0, -1.0
    %v157 = vsel %vm155, 1.0, -1.0
    %v158 = vpack.c.bf16 %v157, %v156
    %159 = vmatprep.subr.bf16.mxu0 0
    %160 = vmatpush1.bf16.msra.mxu0 %v97
    %161 = vmatprep.subr.bf16.mxu0 0
    %162 = vmatpush1.bf16.msra.mxu0 %v98
    %163 = vmatprep.subr.bf16.mxu0 0
    %164 = vmatpush1.bf16.msra.mxu0 %v99
    %165 = vmatprep.subr.bf16.mxu0 0
    %166 = vmatpush1.bf16.msra.mxu0 %v100
    %167 = vmatprep.subr.bf16.mxu0 0
    %168 = vmatpush1.bf16.msra.mxu0 %v101
    %169 = vmatprep.subr.bf16.mxu0 0
    %170 = vmatpush1.bf16.msra.mxu0 %v102
    %171 = vmatprep.subr.bf16.mxu0 0
    %172 = vmatpush1.bf16.msra.mxu0 %v103
    %173 = vmatprep.subr.bf16.mxu0 0
    %174 = vmatpush1.bf16.msra.mxu0 %v104
    %175 = vmatprep.subr.bf16.mxu0 0
    %176 = vmatpush1.bf16.msra.mxu0 0
    %177 = vmatprep.subr.bf16.mxu0 0
    %178 = vmatpush1.bf16.msra.mxu0 0
    %179 = vmatprep.subr.bf16.mxu0 0
    %180 = vmatpush1.bf16.msra.mxu0 0
    %181 = vmatprep.subr.bf16.mxu0 0
    %182 = vmatpush1.bf16.msra.mxu0 0
    %183 = vmatprep.subr.bf16.mxu0 0
    %184 = vmatpush1.bf16.msra.mxu0 0
    %185 = vmatprep.subr.bf16.mxu0 0
    %186 = vmatpush1.bf16.msra.mxu0 0
    %187 = vmatprep.subr.bf16.mxu0 0
    %188 = vmatpush1.bf16.msra.mxu0 0
    %189 = vmatprep.subr.bf16.mxu0 0
    %190 = vmatpush1.bf16.msra.mxu0 0
    %191 = vmatprep.mubr.bf16.mxu0 0
    %192 = vmatmul.mubr.bf16.gmra.mrb[0].mxu0 %v158
    %v193 = vpop.f32.mrb[0].mxu0
    %v194 = vadd.f32 0.0, %v193
    %v195 = vpop.f32.mrb[0].mxu0
    %v196 = vpop.f32.mrb[0].mxu0
    %v197 = vadd.f32 0.0, %v196
    %v198 = vpop.f32.mrb[0].mxu0
    %199 = vdwg.mxu0
    %vm200 = vcmp.gt.f32.partialorder %v194, 0.0
    %vm201 = vcmp.gt.f32.partialorder %v197, 0.0
    %v202 = vsel %vm200, 1.0, -1.0
    %v203 = vsel %vm201, 1.0, -1.0
    %v204 = vpack.c.bf16 %v203, %v202
    %205 = vmatprep.subr.bf16.mxu0 0
    %206 = vmatpush1.bf16.msra.mxu0 %v97
    %207 = vmatprep.subr.bf16.mxu0 0
    %208 = vmatpush1.bf16.msra.mxu0 %v98
    %209 = vmatprep.subr.bf16.mxu0 0
    %210 = vmatpush1.bf16.msra.mxu0 %v99
    %211 = vmatprep.subr.bf16.mxu0 0
    %212 = vmatpush1.bf16.msra.mxu0 %v100
    %213 = vmatprep.subr.bf16.mxu0 0
    %214 = vmatpush1.bf16.msra.mxu0 %v101
    %215 = vmatprep.subr.bf16.mxu0 0
    %216 = vmatpush1.bf16.msra.mxu0 %v102
    %217 = vmatprep.subr.bf16.mxu0 0
    %218 = vmatpush1.bf16.msra.mxu0 %v103
    %219 = vmatprep.subr.bf16.mxu0 0
    %220 = vmatpush1.bf16.msra.mxu0 %v104
    %221 = vmatprep.subr.bf16.mxu0 0
    %222 = vmatpush1.bf16.msra.mxu0 0
    %223 = vmatprep.subr.bf16.mxu0 0
    %224 = vmatpush1.bf16.msra.mxu0 0
    %225 = vmatprep.subr.bf16.mxu0 0
    %226 = vmatpush1.bf16.msra.mxu0 0
    %227 = vmatprep.subr.bf16.mxu0 0
    %228 = vmatpush1.bf16.msra.mxu0 0
    %229 = vmatprep.subr.bf16.mxu0 0
    %230 = vmatpush1.bf16.msra.mxu0 0
    %231 = vmatprep.subr.bf16.mxu0 0
    %232 = vmatpush1.bf16.msra.mxu0 0
    %233 = vmatprep.subr.bf16.mxu0 0
    %234 = vmatpush1.bf16.msra.mxu0 0
    %235 = vmatprep.subr.bf16.mxu0 0
    %236 = vmatpush1.bf16.msra.mxu0 0
    %237 = vmatprep.mubr.bf16.mxu0 0
    %238 = vmatmul.mubr.bf16.gmra.mrb[0].mxu0 %v204
    %v239 = vpop.f32.mrb[0].mxu0
    %v240 = vadd.f32 0.0, %v239
    %v241 = vpop.f32.mrb[0].mxu0
    %v242 = vpop.f32.mrb[0].mxu0
    %v243 = vadd.f32 0.0, %v242
    %v244 = vpop.f32.mrb[0].mxu0
    %245 = vdwg.mxu0
    %vm246 = vcmp.gt.f32.partialorder %v240, 0.0
    %vm247 = vcmp.gt.f32.partialorder %v243, 0.0
    %v248 = vsel %vm246, 1.0, -1.0
    %v249 = vsel %vm247, 1.0, -1.0
    %v250 = vpack.c.bf16 %v249, %v248
    %251 = vmatprep.subr.bf16.mxu0 0
    %252 = vmatpush1.bf16.msra.mxu0 %v97
    %253 = vmatprep.subr.bf16.mxu0 0
    %254 = vmatpush1.bf16.msra.mxu0 %v98
    %255 = vmatprep.subr.bf16.mxu0 0
    %256 = vmatpush1.bf16.msra.mxu0 %v99
    %257 = vmatprep.subr.bf16.mxu0 0
    %258 = vmatpush1.bf16.msra.mxu0 %v100
    %259 = vmatprep.subr.bf16.mxu0 0
    %260 = vmatpush1.bf16.msra.mxu0 %v101
    %261 = vmatprep.subr.bf16.mxu0 0
    %262 = vmatpush1.bf16.msra.mxu0 %v102
    %263 = vmatprep.subr.bf16.mxu0 0
    %264 = vmatpush1.bf16.msra.mxu0 %v103
    %265 = vmatprep.subr.bf16.mxu0 0
    %266 = vmatpush1.bf16.msra.mxu0 %v104
    %267 = vmatprep.subr.bf16.mxu0 0
    %268 = vmatpush1.bf16.msra.mxu0 0
    %269 = vmatprep.subr.bf16.mxu0 0
    %270 = vmatpush1.bf16.msra.mxu0 0
    %271 = vmatprep.subr.bf16.mxu0 0
    %272 = vmatpush1.bf16.msra.mxu0 0
    %273 = vmatprep.subr.bf16.mxu0 0
    %274 = vmatpush1.bf16.msra.mxu0 0
    %275 = vmatprep.subr.bf16.mxu0 0
    %276 = vmatpush1.bf16.msra.mxu0 0
    %277 = vmatprep.subr.bf16.mxu0 0
    %278 = vmatpush1.bf16.msra.mxu0 0
    %279 = vmatprep.subr.bf16.mxu0 0
    %280 = vmatpush1.bf16.msra.mxu0 0
    %281 = vmatprep.subr.bf16.mxu0 0
    %282 = vmatpush1.bf16.msra.mxu0 0
    %283 = vmatprep.mubr.bf16.mxu0 0
    %284 = vmatmul.mubr.bf16.gmra.mrb[0].mxu0 %v250
    %v285 = vpop.f32.mrb[0].mxu0
    %v286 = vadd.f32 0.0, %v285
    %v287 = vpop.f32.mrb[0].mxu0
    %v288 = vpop.f32.mrb[0].mxu0
    %v289 = vadd.f32 0.0, %v288
    %v290 = vpop.f32.mrb[0].mxu0
    %291 = vdwg.mxu0
    %vm292 = vcmp.gt.f32.partialorder %v286, 0.0
    %vm293 = vcmp.gt.f32.partialorder %v289, 0.0
    %v294 = vsel %vm292, 1.0, -1.0
    %v295 = vsel %vm293, 1.0, -1.0
    %v296 = vpack.c.bf16 %v295, %v294
    %v298 = vunpack.c.l.b16 %v296
    %v299 = vunpack.c.h.b16 %v296
    %v300 = vpack.c.b16 %v298, %v298
    %v301 = vpack.c.b16 %v299, %v299
    %304 = vst [vmem:[#allocation7] sm:$0xf] %v300
    %305 = vst [vmem:[#allocation7 + $0x4] sm:$0xf] %v301
    // Predicated region
    $region18: #{tpu_custom_call.1} parent=1 // pred_check
      _
    $region19: #{tpu_custom_call.1} parent=1 // pred_check_branch
      %307 = sbr.rel (0) target = $region21
    $region20: #{tpu_custom_call.1} parent=1 // pred_region
      %s309 = ssub.s32 128, 128
      %310 = vsyncadd [#allocation4], %s309
      %s311 = sshll.u32 [#allocation7], 4
      %s312 = int_to_ptr.vmem [resolvable:$true] %s311
      %317 = dma.vmem_to_hbm [thread:$0]  %s312, 128, %s2, [#allocation4], 64, 64, 4
    $region21: #{tpu_custom_call.1} parent=1 // pred_fallthru
      _
    // Predicated region
    $region22: #{tpu_custom_call.1} parent=1 // pred_check
      _
    $region23: #{tpu_custom_call.1} parent=1 // pred_check_branch
      %319 = sbr.rel (0) target = $region25
    $region24: #{tpu_custom_call.1} parent=1 // pred_region
      %320 = dma.done [#allocation4], 128
    $region25: #{tpu_custom_call.1} parent=1 // pred_fallthru
      _
    %321 = vsyncpa [#allocation3], 1
    %322 = vsyncpa [#allocation6], 1
    %323 = vsyncpa [#allocation4], 1

// kernel: tpu_custom_call.1
$region0: #{tpu_custom_call.1}
  #allocation0 [shape = 'u32[]', space=smem, size = 0x4, offset = 0x4, fixed_abs, tag = 'smem constant byte address 0x4 - core index']
  #allocation1 [shape = 'u32[144,128]{1,0:T(1,128)}', space=vmem, size = 0x12000, scoped, tag = 'internal scratch']
  %s0 = inlined_call_operand.hbm [shape: bf16[16,128], index: 0, kind: input, shape index: {}]
  %s1 = inlined_call_operand.hbm [shape: bf16[128,128], index: 1, kind: input, shape index: {}]
  %s2 = inlined_call_operand.hbm [shape: bf16[16,128], index: 2, kind: output, shape index: {}]
  %s3 = sld [smem:[#allocation0]]
  $region26: #{tpu_custom_call.1} parent=0
    _
  %s5 = ssub.s32 1, %s3
  %s6 = scalar_select 0, %s5, %s3
  $region1: #{tpu_custom_call.1} parent=0
    #allocation2 [shape = 'u8[4096]{0}', space=vmem, size = 0x1000, scoped, tag = 'input window, operand 0, single buffered']
    #allocation3 [shape = 's32[1]{0}', space=sflag, size = 0x4, scoped, tag = 'scoped memory for tpu_custom_call.1']
    #allocation4 [shape = 's32[1]{0}', space=sflag, size = 0x4, scoped, tag = 'scoped memory for tpu_custom_call.1']
    #allocation5 [shape = 'u8[32768]{0}', space=vmem, size = 0x8000, scoped, tag = 'input window, operand 1, single buffered']
    #allocation6 [shape = 's32[1]{0}', space=sflag, size = 0x4, scoped, tag = 'scoped memory for tpu_custom_call.1']
    #allocation7 [shape = 'u8[4096]{0}', space=vmem, size = 0x1000, scoped, tag = 'output window, operand 0, single buffered']
    %7 = vsyncpa [#allocation3], 0
    %8 = vsyncpa [#allocation6], 0
    %9 = vsyncpa [#allocation4], 0
    // Predicated region
    $region2: #{tpu_custom_call.1} parent=1 // pred_check
      _
    $region3: #{tpu_custom_call.1} parent=1 // pred_check_branch
      %11 = sbr.rel (0) target = $region5
    $region4: #{tpu_custom_call.1} parent=1 // pred_region
      %s13 = ssub.s32 128, 128
      %14 = vsyncadd [#allocation3], %s13
      %s15 = sshll.u32 [#allocation2], 4
      %s16 = int_to_ptr.vmem [resolvable:$true] %s15
      %21 = dma.hbm_to_vmem [thread:$0]  %s0, 128, %s16, [#allocation3], 64, 64, 4
    $region5: #{tpu_custom_call.1} parent=1 // pred_fallthru
      _
    // Predicated region
    $region6: #{tpu_custom_call.1} parent=1 // pred_check
      _
    $region7: #{tpu_custom_call.1} parent=1 // pred_check_branch
      %23 = sbr.rel (0) target = $region9
    $region8: #{tpu_custom_call.1} parent=1 // pred_region
      %s25 = ssub.s32 1024, 1024
      %26 = vsyncadd [#allocation6], %s25
      %s27 = sshll.u32 [#allocation5], 4
      %s28 = int_to_ptr.vmem [resolvable:$true] %s27
      %33 = dma.hbm_to_vmem [thread:$0]  %s1, 1024, %s28, [#allocation6], 64, 64, 4
    $region9: #{tpu_custom_call.1} parent=1 // pred_fallthru
      _
    // Predicated region
    $region10: #{tpu_custom_call.1} parent=1 // pred_check
      _
    $region11: #{tpu_custom_call.1} parent=1 // pred_check_branch
      %35 = sbr.rel (0) target = $region13
    $region12: #{tpu_custom_call.1} parent=1 // pred_region
      %36 = dma.done [#allocation3], 128
    $region13: #{tpu_custom_call.1} parent=1 // pred_fallthru
      _
    // Predicated region
    $region14: #{tpu_custom_call.1} parent=1 // pred_check
      _
    $region15: #{tpu_custom_call.1} parent=1 // pred_check_branch
      %38 = sbr.rel (0) target = $region17
    $region16: #{tpu_custom_call.1} parent=1 // pred_region
      %39 = dma.done [#allocation6], 1024
    $region17: #{tpu_custom_call.1} parent=1 // pred_fallthru
      _
    %v41 = vld [vmem:[#allocation5] sm:$0xf]
    %v42 = vld [vmem:[#allocation5 + $0x4] sm:$0xf]
    %v43 = vld [vmem:[#allocation5 + $0x8] sm:$0xf]
    %v44 = vld [vmem:[#allocation5 + $0xc] sm:$0xf]
    %v45 = vld [vmem:[#allocation5 + $0x10] sm:$0xf]
    %v46 = vld [vmem:[#allocation5 + $0x14] sm:$0xf]
    %v47 = vld [vmem:[#allocation5 + $0x18] sm:$0xf]
    %v48 = vld [vmem:[#allocation5 + $0x1c] sm:$0xf]
    %v49 = vld [vmem:[#allocation5 + $0x20] sm:$0xf]
    %v50 = vld [vmem:[#allocation5 + $0x24] sm:$0xf]
    %v51 = vld [vmem:[#allocation5 + $0x28] sm:$0xf]
    %v52 = vld [vmem:[#allocation5 + $0x2c] sm:$0xf]
    %v53 = vld [vmem:[#allocation5 + $0x30] sm:$0xf]
    %v54 = vld [vmem:[#allocation5 + $0x34] sm:$0xf]
    %v55 = vld [vmem:[#allocation5 + $0x38] sm:$0xf]
    %v56 = vld [vmem:[#allocation5 + $0x3c] sm:$0xf]
    %v57 = vld [vmem:[#allocation2] sm:$0xf]
    %v58 = vld [vmem:[#allocation2 + $0x4] sm:$0xf]
    %v61 = vunpack.c.l.b16 %v57
    %v62 = vunpack.c.l.b16 %v58
    %v63 = vpack.c.b16 %v62, %v61
    %v81 = vunpack.c.l.b16 %v41
    %v82 = vunpack.c.l.b16 %v42
    %v83 = vunpack.c.l.b16 %v43
    %v84 = vunpack.c.l.b16 %v44
    %v85 = vunpack.c.l.b16 %v45
    %v86 = vunpack.c.l.b16 %v46
    %v87 = vunpack.c.l.b16 %v47
    %v88 = vunpack.c.l.b16 %v48
    %v89 = vunpack.c.l.b16 %v49
    %v90 = vunpack.c.l.b16 %v50
    %v91 = vunpack.c.l.b16 %v51
    %v92 = vunpack.c.l.b16 %v52
    %v93 = vunpack.c.l.b16 %v53
    %v94 = vunpack.c.l.b16 %v54
    %v95 = vunpack.c.l.b16 %v55
    %v96 = vunpack.c.l.b16 %v56
    %v97 = vpack.c.b16 %v82, %v81
    %v98 = vpack.c.b16 %v84, %v83
    %v99 = vpack.c.b16 %v86, %v85
    %v100 = vpack.c.b16 %v88, %v87
    %v101 = vpack.c.b16 %v90, %v89
    %v102 = vpack.c.b16 %v92, %v91
    %v103 = vpack.c.b16 %v94, %v93
    %v104 = vpack.c.b16 %v96, %v95
    %113 = vmatprep.subr.bf16.mxu0 0
    %114 = vmatpush1.bf16.msra.mxu0 %v97
    %115 = vmatprep.subr.bf16.mxu0 0
    %116 = vmatpush1.bf16.msra.mxu0 %v98
    %117 = vmatprep.subr.bf16.mxu0 0
    %118 = vmatpush1.bf16.msra.mxu0 %v99
    %119 = vmatprep.subr.bf16.mxu0 0
    %120 = vmatpush1.bf16.msra.mxu0 %v100
    %121 = vmatprep.subr.bf16.mxu0 0
    %122 = vmatpush1.bf16.msra.mxu0 %v101
    %123 = vmatprep.subr.bf16.mxu0 0
    %124 = vmatpush1.bf16.msra.mxu0 %v102
    %125 = vmatprep.subr.bf16.mxu0 0
    %126 = vmatpush1.bf16.msra.mxu0 %v103
    %127 = vmatprep.subr.bf16.mxu0 0
    %128 = vmatpush1.bf16.msra.mxu0 %v104
    %129 = vmatprep.subr.bf16.mxu0 0
    %130 = vmatpush1.bf16.msra.mxu0 0
    %131 = vmatprep.subr.bf16.mxu0 0
    %132 = vmatpush1.bf16.msra.mxu0 0
    %133 = vmatprep.subr.bf16.mxu0 0
    %134 = vmatpush1.bf16.msra.mxu0 0
    %135 = vmatprep.subr.bf16.mxu0 0
    %136 = vmatpush1.bf16.msra.mxu0 0
    %137 = vmatprep.subr.bf16.mxu0 0
    %138 = vmatpush1.bf16.msra.mxu0 0
    %139 = vmatprep.subr.bf16.mxu0 0
    %140 = vmatpush1.bf16.msra.mxu0 0
    %141 = vmatprep.subr.bf16.mxu0 0
    %142 = vmatpush1.bf16.msra.mxu0 0
    %143 = vmatprep.subr.bf16.mxu0 0
    %144 = vmatpush1.bf16.msra.mxu0 0
    %145 = vmatprep.mubr.bf16.mxu0 0
    %146 = vmatmul.mubr.bf16.gmra.mrb[0].mxu0 %v63
    %v147 = vpop.f32.mrb[0].mxu0
    %v148 = vadd.f32 0.0, %v147
    %v149 = vpop.f32.mrb[0].mxu0
    %v150 = vpop.f32.mrb[0].mxu0
    %v151 = vadd.f32 0.0, %v150
    %v152 = vpop.f32.mrb[0].mxu0
    %153 = vdwg.mxu0
    %vm154 = vcmp.gt.f32.partialorder %v148, 0.0
    %vm155 = vcmp.gt.f32.partialorder %v151, 0.0
    %v156 = vsel %vm154, 1.0, -1.0
    %v157 = vsel %vm155, 1.0, -1.0
    %v158 = vpack.c.bf16 %v157, %v156
    %159 = vmatprep.subr.bf16.mxu0 0
    %160 = vmatpush1.bf16.msra.mxu0 %v97
    %161 = vmatprep.subr.bf16.mxu0 0
    %162 = vmatpush1.bf16.msra.mxu0 %v98
    %163 = vmatprep.subr.bf16.mxu0 0
    %164 = vmatpush1.bf16.msra.mxu0 %v99
    %165 = vmatprep.subr.bf16.mxu0 0
    %166 = vmatpush1.bf16.msra.mxu0 %v100
    %167 = vmatprep.subr.bf16.mxu0 0
    %168 = vmatpush1.bf16.msra.mxu0 %v101
    %169 = vmatprep.subr.bf16.mxu0 0
    %170 = vmatpush1.bf16.msra.mxu0 %v102
    %171 = vmatprep.subr.bf16.mxu0 0
    %172 = vmatpush1.bf16.msra.mxu0 %v103
    %173 = vmatprep.subr.bf16.mxu0 0
    %174 = vmatpush1.bf16.msra.mxu0 %v104
    %175 = vmatprep.subr.bf16.mxu0 0
    %176 = vmatpush1.bf16.msra.mxu0 0
    %177 = vmatprep.subr.bf16.mxu0 0
    %178 = vmatpush1.bf16.msra.mxu0 0
    %179 = vmatprep.subr.bf16.mxu0 0
    %180 = vmatpush1.bf16.msra.mxu0 0
    %181 = vmatprep.subr.bf16.mxu0 0
    %182 = vmatpush1.bf16.msra.mxu0 0
    %183 = vmatprep.subr.bf16.mxu0 0
    %184 = vmatpush1.bf16.msra.mxu0 0
    %185 = vmatprep.subr.bf16.mxu0 0
    %186 = vmatpush1.bf16.msra.mxu0 0
    %187 = vmatprep.subr.bf16.mxu0 0
    %188 = vmatpush1.bf16.msra.mxu0 0
    %189 = vmatprep.subr.bf16.mxu0 0
    %190 = vmatpush1.bf16.msra.mxu0 0
    %191 = vmatprep.mubr.bf16.mxu0 0
    %192 = vmatmul.mubr.bf16.gmra.mrb[0].mxu0 %v158
    %v193 = vpop.f32.mrb[0].mxu0
    %v194 = vadd.f32 0.0, %v193
    %v195 = vpop.f32.mrb[0].mxu0
    %v196 = vpop.f32.mrb[0].mxu0
    %v197 = vadd.f32 0.0, %v196
    %v198 = vpop.f32.mrb[0].mxu0
    %199 = vdwg.mxu0
    %vm200 = vcmp.gt.f32.partialorder %v194, 0.0
    %vm201 = vcmp.gt.f32.partialorder %v197, 0.0
    %v202 = vsel %vm200, 1.0, -1.0
    %v203 = vsel %vm201, 1.0, -1.0
    %v204 = vpack.c.bf16 %v203, %v202
    %205 = vmatprep.subr.bf16.mxu0 0
    %206 = vmatpush1.bf16.msra.mxu0 %v97
    %207 = vmatprep.subr.bf16.mxu0 0
    %208 = vmatpush1.bf16.msra.mxu0 %v98
    %209 = vmatprep.subr.bf16.mxu0 0
    %210 = vmatpush1.bf16.msra.mxu0 %v99
    %211 = vmatprep.subr.bf16.mxu0 0
    %212 = vmatpush1.bf16.msra.mxu0 %v100
    %213 = vmatprep.subr.bf16.mxu0 0
    %214 = vmatpush1.bf16.msra.mxu0 %v101
    %215 = vmatprep.subr.bf16.mxu0 0
    %216 = vmatpush1.bf16.msra.mxu0 %v102
    %217 = vmatprep.subr.bf16.mxu0 0
    %218 = vmatpush1.bf16.msra.mxu0 %v103
    %219 = vmatprep.subr.bf16.mxu0 0
    %220 = vmatpush1.bf16.msra.mxu0 %v104
    %221 = vmatprep.subr.bf16.mxu0 0
    %222 = vmatpush1.bf16.msra.mxu0 0
    %223 = vmatprep.subr.bf16.mxu0 0
    %224 = vmatpush1.bf16.msra.mxu0 0
    %225 = vmatprep.subr.bf16.mxu0 0
    %226 = vmatpush1.bf16.msra.mxu0 0
    %227 = vmatprep.subr.bf16.mxu0 0
    %228 = vmatpush1.bf16.msra.mxu0 0
    %229 = vmatprep.subr.bf16.mxu0 0
    %230 = vmatpush1.bf16.msra.mxu0 0
    %231 = vmatprep.subr.bf16.mxu0 0
    %232 = vmatpush1.bf16.msra.mxu0 0
    %233 = vmatprep.subr.bf16.mxu0 0
    %234 = vmatpush1.bf16.msra.mxu0 0
    %235 = vmatprep.subr.bf16.mxu0 0
    %236 = vmatpush1.bf16.msra.mxu0 0
    %237 = vmatprep.mubr.bf16.mxu0 0
    %238 = vmatmul.mubr.bf16.gmra.mrb[0].mxu0 %v204
    %v239 = vpop.f32.mrb[0].mxu0
    %v240 = vadd.f32 0.0, %v239
    %v241 = vpop.f32.mrb[0].mxu0
    %v242 = vpop.f32.mrb[0].mxu0
    %v243 = vadd.f32 0.0, %v242
    %v244 = vpop.f32.mrb[0].mxu0
    %245 = vdwg.mxu0
    %vm246 = vcmp.gt.f32.partialorder %v240, 0.0
    %vm247 = vcmp.gt.f32.partialorder %v243, 0.0
    %v248 = vsel %vm246, 1.0, -1.0
    %v249 = vsel %vm247, 1.0, -1.0
    %v250 = vpack.c.bf16 %v249, %v248
    %251 = vmatprep.subr.bf16.mxu0 0
    %252 = vmatpush1.bf16.msra.mxu0 %v97
    %253 = vmatprep.subr.bf16.mxu0 0
    %254 = vmatpush1.bf16.msra.mxu0 %v98
    %255 = vmatprep.subr.bf16.mxu0 0
    %256 = vmatpush1.bf16.msra.mxu0 %v99
    %257 = vmatprep.subr.bf16.mxu0 0
    %258 = vmatpush1.bf16.msra.mxu0 %v100
    %259 = vmatprep.subr.bf16.mxu0 0
    %260 = vmatpush1.bf16.msra.mxu0 %v101
    %261 = vmatprep.subr.bf16.mxu0 0
    %262 = vmatpush1.bf16.msra.mxu0 %v102
    %263 = vmatprep.subr.bf16.mxu0 0
    %264 = vmatpush1.bf16.msra.mxu0 %v103
    %265 = vmatprep.subr.bf16.mxu0 0
    %266 = vmatpush1.bf16.msra.mxu0 %v104
    %267 = vmatprep.subr.bf16.mxu0 0
    %268 = vmatpush1.bf16.msra.mxu0 0
    %269 = vmatprep.subr.bf16.mxu0 0
    %270 = vmatpush1.bf16.msra.mxu0 0
    %271 = vmatprep.subr.bf16.mxu0 0
    %272 = vmatpush1.bf16.msra.mxu0 0
    %273 = vmatprep.subr.bf16.mxu0 0
    %274 = vmatpush1.bf16.msra.mxu0 0
    %275 = vmatprep.subr.bf16.mxu0 0
    %276 = vmatpush1.bf16.msra.mxu0 0
    %277 = vmatprep.subr.bf16.mxu0 0
    %278 = vmatpush1.bf16.msra.mxu0 0
    %279 = vmatprep.subr.bf16.mxu0 0
    %280 = vmatpush1.bf16.msra.mxu0 0
    %281 = vmatprep.subr.bf16.mxu0 0
    %282 = vmatpush1.bf16.msra.mxu0 0
    %283 = vmatprep.mubr.bf16.mxu0 0
    %284 = vmatmul.mubr.bf16.gmra.mrb[0].mxu0 %v250
    %v285 = vpop.f32.mrb[0].mxu0
    %v286 = vadd.f32 0.0, %v285
    %v287 = vpop.f32.mrb[0].mxu0
    %v288 = vpop.f32.mrb[0].mxu0
    %v289 = vadd.f32 0.0, %v288
    %v290 = vpop.f32.mrb[0].mxu0
    %291 = vdwg.mxu0
    %vm292 = vcmp.gt.f32.partialorder %v286, 0.0
    %vm293 = vcmp.gt.f32.partialorder %v289, 0.0
    %v294 = vsel %vm292, 1.0, -1.0
    %v295 = vsel %vm293, 1.0, -1.0
    %v296 = vpack.c.bf16 %v295, %v294
    %v298 = vunpack.c.l.b16 %v296
    %v299 = vunpack.c.h.b16 %v296
    %v300 = vpack.c.b16 %v298, %v298
    %v301 = vpack.c.b16 %v299, %v299
    %304 = vst [vmem:[#allocation7] sm:$0xf] %v300
    %305 = vst [vmem:[#allocation7 + $0x4] sm:$0xf] %v301
    // Predicated region
    $region18: #{tpu_custom_call.1} parent=1 // pred_check
      _
    $region19: #{tpu_custom_call.1} parent=1 // pred_check_branch
      %307 = sbr.rel (0) target = $region21
    $region20: #{tpu_custom_call.1} parent=1 // pred_region
      %s309 = ssub.s32 128, 128
      %310 = vsyncadd [#allocation4], %s309
      %s311 = sshll.u32 [#allocation7], 4
      %s312 = int_to_ptr.vmem [resolvable:$true] %s311
      %317 = dma.vmem_to_hbm [thread:$0]  %s312, 128, %s2, [#allocation4], 64, 64, 4
    $region21: #{tpu_custom_call.1} parent=1 // pred_fallthru
      _
    // Predicated region
    $region22: #{tpu_custom_call.1} parent=1 // pred_check
      _
    $region23: #{tpu_custom_call.1} parent=1 // pred_check_branch
      %319 = sbr.rel (0) target = $region25
    $region24: #{tpu_custom_call.1} parent=1 // pred_region
      %320 = dma.done [#allocation4], 128
    $region25: #{tpu_custom_call.1} parent=1 // pred_fallthru
      _
    %321 = vsyncpa [#allocation3], 1
    %322 = vsyncpa [#allocation6], 1
    %323 = vsyncpa [#allocation4], 1

</llo_original>
